<compile_context>
chip_gen: v5e
topology: v5e:2x2
jax: 0.10.0
libtpu: 0.0.40
codegen_flags: <defaults>
</compile_context>

<pallas_src>
import functools

import jax
import jax.numpy as jnp
from jax.experimental import pallas as pl
from jax.experimental.pallas import tpu as pltpu

NUM_GROUPS = 32   # GroupNorm(32, d_model); PyTorch default eps
GN_EPS = 1e-5


# ----------------------------------------------------------------------------
# Pallas kernel 1: projection conv (as matmul, pixels on the lane axis) + GroupNorm
# ----------------------------------------------------------------------------
def _proj_gn_kernel(x_ref, w_ref, b_ref, gamma_ref, beta_ref, o_ref, *, num_groups):
    # x_ref: (1, Cin, P)   w_ref: (D, Cin)   b/gamma/beta: (D, 1)   o_ref: (1, D, P)
    p = x_ref.shape[-1]
    d = w_ref.shape[0]
    gs = d // num_groups
    w = w_ref[...].astype(jnp.bfloat16)          # bf16 MXU inputs, f32 accumulation
    x = x_ref[0].astype(jnp.bfloat16)                                     # (Cin, P)
    y = jnp.dot(w, x, preferred_element_type=jnp.float32) + b_ref[...]    # (D, P)
    # one-pass stats: sum(y) and sum(y*y)
    if gs == 1:
        s1 = jnp.sum(y, axis=1, keepdims=True)                            # (D, 1)
        s2 = jnp.sum(y * y, axis=1, keepdims=True)
        cnt = float(p)
    else:
        # D lives on the sublane axis -> splitting it into (G, gs) is cheap
        # (no lane relayout).
        yg = y.reshape(num_groups, gs, p)
        s1 = jnp.sum(yg, axis=(1, 2), keepdims=True)                      # (G,1,1)
        s2 = jnp.sum(yg * yg, axis=(1, 2), keepdims=True)
        s1 = jnp.broadcast_to(s1, (num_groups, gs, 1)).reshape(d, 1)
        s2 = jnp.broadcast_to(s2, (num_groups, gs, 1)).reshape(d, 1)
        cnt = float(gs * p)
    mean = s1 / cnt
    var = s2 / cnt - mean * mean
    inv_std = jax.lax.rsqrt(var + GN_EPS)
    scale = gamma_ref[...] * inv_std              # fold the GN affine into one FMA
    shift = beta_ref[...] - mean * scale
    o_ref[0] = (y * scale + shift).astype(o_ref.dtype)


def proj_groupnorm(x_ncp, w, b, gamma, beta, *, num_groups=NUM_GROUPS):
    """x_ncp: (N, Cin, P) -> (N, D, P).  Fused conv-as-matmul + GroupNorm."""
    n, cin, p = x_ncp.shape
    d = w.shape[0]
    kern = functools.partial(_proj_gn_kernel, num_groups=num_groups)
    # TODO(synk): for production sizes (Cin up to 2048, P ~10-20k, d_model=256) this
    # should additionally tile P ("arbitrary" axis, two-pass GroupNorm with pl.when
    # accumulators) so each block fits v7x's 64 MiB VMEM.  At demo shapes a full-P
    # block per sample is the fastest option.
    return pl.pallas_call(
        kern,
        out_shape=jax.ShapeDtypeStruct((n, d, p), jnp.float32),
        grid_spec=pltpu.PrefetchScalarGridSpec(
            num_scalar_prefetch=0,
            grid=(n,),
            in_specs=[
                pl.BlockSpec((1, cin, p), lambda i: (i, 0, 0)),
                pl.BlockSpec((d, cin), lambda i: (0, 0)),
                pl.BlockSpec((d, 1), lambda i: (0, 0)),
                pl.BlockSpec((d, 1), lambda i: (0, 0)),
                pl.BlockSpec((d, 1), lambda i: (0, 0)),
            ],
            out_specs=pl.BlockSpec((1, d, p), lambda i: (i, 0, 0)),
        ),
        compiler_params=pltpu.CompilerParams(dimension_semantics=("parallel",)),
    )(x_ncp, w, b.reshape(d, 1), gamma.reshape(d, 1), beta.reshape(d, 1))


# ----------------------------------------------------------------------------
# Pallas kernel 2: prediction heads (is_referred + box MLP + reference update)
# ----------------------------------------------------------------------------
def _heads_kernel(hs_ref, ref_ref, wcat_ref, bcat_ref, w2_ref, b2_ref, o_ref,
                  *, d_model):
    h = hs_ref[...].astype(jnp.bfloat16)                                     # (R, D)
    # fused first-layer matmul: [box-MLP hidden | is_referred] = h @ [w1 | wir]
    z = jnp.dot(h, wcat_ref[...].astype(jnp.bfloat16),
                preferred_element_type=jnp.float32) + bcat_ref[...]          # (R,D+2)
    hid = jnp.maximum(z[:, :d_model], 0.0)                                   # (R, D)
    ir = z[:, d_model:]                                                      # (R, 2)
    box = jnp.dot(hid.astype(jnp.bfloat16), w2_ref[...].astype(jnp.bfloat16),
                  preferred_element_type=jnp.float32) + b2_ref[...]          # (R, 4)
    # reference correction: box[..., :2] += inverse_sigmoid(reference); sigmoid
    r = jnp.clip(ref_ref[...].astype(jnp.float32), 0.0, 1.0)                 # (R, 2)
    eps = 1e-5
    inv = jnp.log(jnp.maximum(r, eps) / jnp.maximum(1.0 - r, eps))
    box = jax.nn.sigmoid(box + jnp.concatenate([inv, jnp.zeros_like(inv)], axis=-1))
    # lane-packed single store: [box(4) | is_referred(2) | pad(2)]
    o_ref[...] = jnp.concatenate([box, ir, jnp.zeros_like(ir)],
                                 axis=-1).astype(o_ref.dtype)


def prediction_heads(hs_flat, ref_flat, params, *, row_tile=512):
    """hs_flat: (R, D), ref_flat: (R, 2) -> boxes (R, 4), is_referred (R, 2)."""
    rows, d = hs_flat.shape
    wir, bir = params["is_referred"]
    w1, b1, w2, b2 = params["box"]
    wcat = jnp.concatenate([w1, wir], axis=1)                                # (D, D+2)
    bcat = jnp.concatenate([b1, bir]).reshape(1, d + 2)

    # Tile the flattened (layers*t*b*queries) row axis; each tile is a "parallel"
    # grid step so it scales to production row counts and megacore shards.
    rows8 = ((rows + 7) // 8) * 8
    tile = min(row_tile, rows8)
    rows_pad = ((rows8 + tile - 1) // tile) * tile
    if rows_pad != rows:
        hs_p = jnp.pad(hs_flat, ((0, rows_pad - rows), (0, 0)))
        ref_p = jnp.pad(ref_flat, ((0, rows_pad - rows), (0, 0)))
    else:
        hs_p, ref_p = hs_flat, ref_flat

    packed = pl.pallas_call(
        functools.partial(_heads_kernel, d_model=d),
        out_shape=jax.ShapeDtypeStruct((rows_pad, 8), jnp.float32),
        grid_spec=pltpu.PrefetchScalarGridSpec(
            num_scalar_prefetch=0,
            grid=(rows_pad // tile,),
            in_specs=[
                pl.BlockSpec((tile, d), lambda i: (i, 0)),
                pl.BlockSpec((tile, 2), lambda i: (i, 0)),
                pl.BlockSpec((d, d + 2), lambda i: (0, 0)),
                pl.BlockSpec((1, d + 2), lambda i: (0, 0)),
                pl.BlockSpec((d, 4), lambda i: (0, 0)),
                pl.BlockSpec((1, 4), lambda i: (0, 0)),
            ],
            out_specs=pl.BlockSpec((tile, 8), lambda i: (i, 0)),
        ),
        compiler_params=pltpu.CompilerParams(dimension_semantics=("parallel",)),
    )(hs_p, ref_p, wcat, bcat, w2, b2.reshape(1, 4))
    return packed[:rows, :4], packed[:rows, 4:6]


# ----------------------------------------------------------------------------
# JAX glue
# ----------------------------------------------------------------------------
def im2col_3x3_s2(x):
    """x: (N, C, H, W) -> (N, C*9, Ho*Wo) for kernel=3, stride=2, pad=1.
    Column order is (c, ki, kj)-major to match torch weight.reshape(D, C*9)."""
    n, c, h, w = x.shape
    xp = jnp.pad(x, ((0, 0), (0, 0), (1, 1), (1, 1)))
    ho = (h + 2 - 3) // 2 + 1
    wo = (w + 2 - 3) // 2 + 1
    taps = [xp[:, :, i:i + 2 * ho:2, j:j + 2 * wo:2]
            for i in range(3) for j in range(3)]                    # each (N,C,Ho,Wo)
    patches = jnp.stack(taps, axis=2)                               # (N, C, 9, Ho, Wo)
    cols = patches.reshape(n, c * 9, ho * wo)                       # (N, C*9, P)
    return cols, ho, wo


def xavier_uniform(key, shape, fan_in, fan_out):
    bound = (6.0 / (fan_in + fan_out)) ** 0.5
    return jax.random.uniform(key, shape, jnp.float32, -bound, bound)


def linear_init(key, fan_in, fan_out):
    kw, kb = jax.random.split(key)
    bound = 1.0 / (fan_in ** 0.5)
    w = jax.random.uniform(kw, (fan_in, fan_out), jnp.float32, -bound, bound)
    b = jax.random.uniform(kb, (fan_out,), jnp.float32, -bound, bound)
    return w, b


def make_params(key, backbone_channels, d_model, num_queries, start_level, extra_levels):
    keys = jax.random.split(key, 6)
    params = {"proj": []}
    # 1x1 conv projections for backbone levels [start_level, end)
    for idx, lvl in enumerate(range(start_level, len(backbone_channels))):
        cin = backbone_channels[lvl]
        w = xavier_uniform(jax.random.fold_in(keys[0], idx), (d_model, cin),
                           fan_in=cin, fan_out=d_model)
        params["proj"].append((w, jnp.zeros((d_model,), jnp.float32),
                               jnp.ones((d_model,), jnp.float32),
                               jnp.zeros((d_model,), jnp.float32)))
    # extra levels: 3x3 stride-2 conv, im2col'd weight (D, Cin*9)
    for e in range(extra_levels):
        cin = backbone_channels[-1] if e == 0 else d_model
        w = xavier_uniform(jax.random.fold_in(keys[1], e), (d_model, cin * 9),
                           fan_in=cin * 9, fan_out=d_model * 9)
        params["proj"].append((w, jnp.zeros((d_model,), jnp.float32),
                               jnp.ones((d_model,), jnp.float32),
                               jnp.zeros((d_model,), jnp.float32)))
    params["is_referred"] = linear_init(keys[2], d_model, 2)
    w1, b1 = linear_init(keys[3], d_model, d_model)
    w2, b2 = linear_init(keys[4], d_model, 4)
    params["box"] = (w1, b1, w2, b2)
    # query_embed exists in the module; consumed only by the (stubbed) transformer.
    params["query_embed"] = jax.random.normal(keys[5], (num_queries, 2 * d_model))
    return params


def deformable_stmotr_forward(params, backbone_feats, backbone_masks, hs,
                              inter_references, *, start_level=1, extra_levels=1,
                              d_model=32, aux_loss=False):
    # TODO(synk): backbone_build(...) is not provided; feature maps/masks are inputs.
    backbone_end_level = len(backbone_feats)
    feature_levels = backbone_end_level - start_level + extra_levels

    vid_embeds, vid_pad_mask = [], []
    for level in range(feature_levels):
        if level + start_level < backbone_end_level:
            src = backbone_feats[level + start_level]
            mask = backbone_masks[level + start_level]
        elif level + start_level == backbone_end_level:
            src = backbone_feats[-1]
            mask = backbone_masks[-1]
        else:
            # chained extra levels consume the previous projected level (matches the
            # reference, where `src`/`mask` carry over from the prior iteration)
            src = vid_embeds[-1]
            mask = vid_pad_mask[-1]
        t, b, c, h, w = src.shape
        x = src.reshape(t * b, c, h, w)                          # '(t b) c h w'
        wmat, bias, gamma, beta = params["proj"][level]
        if level < backbone_end_level - start_level:
            # 1x1 conv: channel-major flatten is a pure reshape (no transpose)
            y = proj_groupnorm(x.reshape(t * b, c, h * w), wmat, bias, gamma, beta)
            ho, wo = h, w
        else:
            # TODO(synk): im2col could move inside the kernel (9 offset slices + 9
            # accumulated matmuls) to avoid materializing 9x the feature map in HBM.
            cols, ho, wo = im2col_3x3_s2(x)                      # (N, C*9, P)
            y = proj_groupnorm(cols, wmat, bias, gamma, beta)
        vid_embeds.append(y.reshape(t, b, d_model, ho, wo))      # already channel-major
        if (ho, wo) == (h, w):
            m = mask                                             # skip no-op resize
        else:
            m = jax.image.resize(mask.astype(jnp.float32), (t, b, ho, wo),
                                 method="nearest") > 0.5
        vid_pad_mask.append(m)

    # TODO(synk): STDeformableTransformer (multi-scale deformable attention) has no
    # provided reference; hs / inter_references stand in for its outputs.
    ld, t, b, q, d = hs.shape
    boxes, is_ref = prediction_heads(hs.reshape(ld * t * b * q, d),
                                     inter_references.reshape(ld * t * b * q, 2),
                                     params)
    boxes = boxes.reshape(ld, t, b, q, 4)
    is_ref = is_ref.reshape(ld, t, b, q, 2)
    out = {"pred_boxes": boxes[-1], "pred_is_referred": is_ref[-1]}
    if aux_loss:
        out["aux_outputs"] = [{"pred_boxes": boxes[i], "pred_is_referred": is_ref[i]}
                              for i in range(ld - 1)]
    return out, vid_embeds, vid_pad_mask


# ----------------------------------------------------------------------------
# Pure-JAX references (same bf16 matmul casts) for correctness checks
# ----------------------------------------------------------------------------
def proj_groupnorm_ref(x_ncp, w, b, gamma, beta, num_groups=NUM_GROUPS):
    y = jnp.einsum("dc,ncp->ndp", w.astype(jnp.bfloat16), x_ncp.astype(jnp.bfloat16),
                   preferred_element_type=jnp.float32) + b[None, :, None]
    n, d, p = y.shape
    gs = d // num_groups
    yg = y.reshape(n, num_groups, gs * p)
    mean = jnp.mean(yg, axis=2, keepdims=True)
    var = jnp.mean((yg - mean) ** 2, axis=2, keepdims=True)
    yn = ((yg - mean) * jax.lax.rsqrt(var + GN_EPS)).reshape(n, d, p)
    return yn * gamma[None, :, None] + beta[None, :, None]


def heads_ref(hs_flat, ref_flat, params):
    wir, bir = params["is_referred"]
    w1, b1, w2, b2 = params["box"]
    h16 = hs_flat.astype(jnp.bfloat16)
    ir = jnp.dot(h16, wir.astype(jnp.bfloat16),
                 preferred_element_type=jnp.float32) + bir
    hid = jnp.maximum(jnp.dot(h16, w1.astype(jnp.bfloat16),
                              preferred_element_type=jnp.float32) + b1, 0.0)
    box = jnp.dot(hid.astype(jnp.bfloat16), w2.astype(jnp.bfloat16),
                  preferred_element_type=jnp.float32) + b2
    r = jnp.clip(ref_flat, 0.0, 1.0)
    inv = jnp.log(jnp.maximum(r, 1e-5) / jnp.maximum(1.0 - r, 1e-5))
    box = box.at[:, :2].add(inv)
    return jax.nn.sigmoid(box), ir


if __name__ == "__main__":
    key = jax.random.PRNGKey(0)
    T, B = 2, 1
    d_model = 32
    num_queries = 8
    num_dec_layers = 3
    start_level, extra_levels = 1, 1
    backbone_channels = [4, 8, 16]
    spatial = [(16, 16), (8, 8), (4, 4)]

    k_feat, k_hs, k_ref, k_par = jax.random.split(key, 4)
    backbone_feats, backbone_masks = [], []
    for lvl, (c, (h, w)) in enumerate(zip(backbone_channels, spatial)):
        backbone_feats.append(
            jax.random.normal(jax.random.fold_in(k_feat, lvl), (T, B, c, h, w),
                              jnp.float32))
        backbone_masks.append(jnp.zeros((T, B, h, w), dtype=bool))

    hs = jax.random.normal(k_hs, (num_dec_layers, T, B, num_queries, d_model),
                           jnp.float32)
    inter_references = jax.random.uniform(
        k_ref, (num_dec_layers, T, B, num_queries, 2), jnp.float32, 0.05, 0.95)

    params = make_params(k_par, backbone_channels, d_model, num_queries,
                         start_level, extra_levels)

    out, vid_embeds, vid_pad_mask = deformable_stmotr_forward(
        params, backbone_feats, backbone_masks, hs, inter_references,
        start_level=start_level, extra_levels=extra_levels, d_model=d_model)

    jax.block_until_ready(out["pred_boxes"])
    jax.block_until_ready(out["pred_is_referred"])
    jax.block_until_ready(vid_embeds)

    # shape checks (start_level=1: levels are backbone[1], backbone[2], extra stride-2)
    assert out["pred_boxes"].shape == (T, B, num_queries, 4)
    assert out["pred_is_referred"].shape == (T, B, num_queries, 2)
    assert vid_embeds[0].shape == (T, B, d_model, 8, 8)
    assert vid_embeds[1].shape == (T, B, d_model, 4, 4)
    assert vid_embeds[2].shape == (T, B, d_model, 2, 2)
    assert vid_pad_mask[0].shape == (T, B, 8, 8)
    assert vid_pad_mask[2].shape == (T, B, 2, 2)

    # numerical checks vs pure-JAX references using identical bf16 matmul casts
    x0 = backbone_feats[1].reshape(T * B, backbone_channels[1], 8 * 8)
    ref0 = proj_groupnorm_ref(x0, *params["proj"][0])
    assert jnp.allclose(vid_embeds[0].reshape(T * B, d_model, 8 * 8), ref0,
                        atol=2e-3, rtol=2e-3)

    cols2, _, _ = im2col_3x3_s2(
        backbone_feats[2].reshape(T * B, backbone_channels[2], 4, 4))
    ref2 = proj_groupnorm_ref(cols2, *params["proj"][2])
    assert jnp.allclose(vid_embeds[2].reshape(T * B, d_model, 2 * 2), ref2,
                        atol=2e-3, rtol=2e-3)

    box_r, ir_r = heads_ref(hs.reshape(-1, d_model),
                            inter_references.reshape(-1, 2), params)
    assert jnp.allclose(out["pred_boxes"],
                        box_r.reshape(num_dec_layers, T, B, num_queries, 4)[-1],
                        atol=2e-3, rtol=2e-3)
    assert jnp.allclose(out["pred_is_referred"],
                        ir_r.reshape(num_dec_layers, T, B, num_queries, 2)[-1],
                        atol=2e-3, rtol=2e-3)

    print("KERNEL_OK")
</pallas_src>

<mosaic_0001>
module attributes {stable_mosaic.version = 11 : i64} {
  func.func @_proj_gn_kernel(%arg0: i32, %arg1: memref<1x8x64xf32, #tpu.memory_space<vmem>>, %arg2: memref<32x8xf32, #tpu.memory_space<vmem>>, %arg3: memref<32x1xf32, #tpu.memory_space<vmem>>, %arg4: memref<32x1xf32, #tpu.memory_space<vmem>>, %arg5: memref<32x1xf32, #tpu.memory_space<vmem>>, %arg6: memref<1x32x64xf32, #tpu.memory_space<vmem>>) attributes {dimension_semantics = [#tpu.dimension_semantics<parallel>], iteration_bounds = array<i64: 2>, scalar_prefetch = 0 : i64, scratch_operands = 0 : i64, tpu.core_type = #tpu.core_type<tc>, window_params = [{transform_indices = @transform_0, window_bounds = array<i64: 1, 8, 64>}, {pipeline_mode = #tpu.pipeline_mode<synchronous>, transform_indices = @transform_1, window_bounds = array<i64: 32, 8>}, {pipeline_mode = #tpu.pipeline_mode<synchronous>, transform_indices = @transform_2, window_bounds = array<i64: 32, 1>}, {pipeline_mode = #tpu.pipeline_mode<synchronous>, transform_indices = @transform_3, window_bounds = array<i64: 32, 1>}, {pipeline_mode = #tpu.pipeline_mode<synchronous>, transform_indices = @transform_4, window_bounds = array<i64: 32, 1>}, {transform_indices = @transform_5, window_bounds = array<i64: 1, 32, 64>}]} {
    %c0 = arith.constant 0 : index
    %c0_0 = arith.constant 0 : index
    %0 = vector.load %arg2[%c0, %c0_0] : memref<32x8xf32, #tpu.memory_space<vmem>>, vector<32x8xf32>
    %1 = arith.truncf %0 : vector<32x8xf32> to vector<32x8xbf16>
    %c0_1 = arith.constant 0 : index
    %c0_2 = arith.constant 0 : index
    %c0_3 = arith.constant 0 : index
    %2 = vector.load %arg1[%c0_1, %c0_2, %c0_3] : memref<1x8x64xf32, #tpu.memory_space<vmem>>, vector<1x8x64xf32>
    %3 = vector.shape_cast %2 : vector<1x8x64xf32> to vector<8x64xf32>
    %4 = arith.truncf %3 : vector<8x64xf32> to vector<8x64xbf16>
    %cst = arith.constant dense<0.000000e+00> : vector<32x64xf32>
    %5 = tpu.matmul %1, %4, %cst {dimension_numbers = #tpu.dot_dimension_numbers<[1], [0], [0], [1], [0, 0, 1, 1], [], []>} : vector<32x8xbf16>, vector<8x64xbf16>, vector<32x64xf32> -> vector<32x64xf32>
    %c0_4 = arith.constant 0 : index
    %c0_5 = arith.constant 0 : index
    %6 = vector.load %arg3[%c0_4, %c0_5] : memref<32x1xf32, #tpu.memory_space<vmem>>, vector<32x1xf32>
    %7 = vector.broadcast %6 : vector<32x1xf32> to vector<32x64xf32>
    %8 = arith.addf %5, %7 : vector<32x64xf32>
    %cst_6 = arith.constant dense<0.000000e+00> : vector<32xf32>
    %9 = vector.multi_reduction <add>, %8, %cst_6 [1] : vector<32x64xf32> to vector<32xf32>
    %10 = vector.shape_cast %9 : vector<32xf32> to vector<32x1xf32>
    %11 = arith.mulf %8, %8 : vector<32x64xf32>
    %cst_7 = arith.constant dense<0.000000e+00> : vector<32xf32>
    %12 = vector.multi_reduction <add>, %11, %cst_7 [1] : vector<32x64xf32> to vector<32xf32>
    %13 = vector.shape_cast %12 : vector<32xf32> to vector<32x1xf32>
    %cst_8 = arith.constant 6.400000e+01 : f32
    %14 = vector.broadcast %cst_8 : f32 to vector<32x1xf32>
    %15 = arith.divf %10, %14 : vector<32x1xf32>
    %cst_9 = arith.constant 6.400000e+01 : f32
    %16 = vector.broadcast %cst_9 : f32 to vector<32x1xf32>
    %17 = arith.divf %13, %16 : vector<32x1xf32>
    %18 = arith.mulf %15, %15 : vector<32x1xf32>
    %19 = arith.subf %17, %18 : vector<32x1xf32>
    %cst_10 = arith.constant 9.99999974E-6 : f32
    %20 = vector.broadcast %cst_10 : f32 to vector<32x1xf32>
    %21 = arith.addf %19, %20 : vector<32x1xf32>
    %22 = math.rsqrt %21 : vector<32x1xf32>
    %c0_11 = arith.constant 0 : index
    %c0_12 = arith.constant 0 : index
    %23 = vector.load %arg4[%c0_11, %c0_12] : memref<32x1xf32, #tpu.memory_space<vmem>>, vector<32x1xf32>
    %24 = arith.mulf %23, %22 : vector<32x1xf32>
    %c0_13 = arith.constant 0 : index
    %c0_14 = arith.constant 0 : index
    %25 = vector.load %arg5[%c0_13, %c0_14] : memref<32x1xf32, #tpu.memory_space<vmem>>, vector<32x1xf32>
    %26 = arith.mulf %15, %24 : vector<32x1xf32>
    %27 = arith.subf %25, %26 : vector<32x1xf32>
    %28 = vector.broadcast %24 : vector<32x1xf32> to vector<32x64xf32>
    %29 = arith.mulf %8, %28 : vector<32x64xf32>
    %30 = vector.broadcast %27 : vector<32x1xf32> to vector<32x64xf32>
    %31 = arith.addf %29, %30 : vector<32x64xf32>
    %c0_15 = arith.constant 0 : index
    %c0_16 = arith.constant 0 : index
    %c0_17 = arith.constant 0 : index
    %32 = vector.load %arg6[%c0_15, %c0_16, %c0_17] : memref<1x32x64xf32, #tpu.memory_space<vmem>>, vector<1x32x64xf32>
    %33 = vector.shape_cast %32 : vector<1x32x64xf32> to vector<32x64xf32>
    %34 = vector.shape_cast %31 : vector<32x64xf32> to vector<1x32x64xf32>
    tpu.vector_store %arg6[%c0_15, %c0_16, %c0_17], %34 {strides = array<i32>} : memref<1x32x64xf32, #tpu.memory_space<vmem>>, vector<1x32x64xf32>,
    return
  }
  func.func @transform_0(%arg0: i32) -> (i32, i32, i32) {
    %c0_i32 = arith.constant 0 : i32
    %c0_i32_0 = arith.constant 0 : i32
    %c0_i32_1 = arith.constant 0 : i32
    return %arg0, %c0_i32, %c0_i32_0 : i32, i32, i32
  }
  func.func @transform_1(%arg0: i32) -> (i32, i32) {
    %c0_i32 = arith.constant 0 : i32
    %c0_i32_0 = arith.constant 0 : i32
    %c0_i32_1 = arith.constant 0 : i32
    return %c0_i32, %c0_i32_0 : i32, i32
  }
  func.func @transform_2(%arg0: i32) -> (i32, i32) {
    %c0_i32 = arith.constant 0 : i32
    %c0_i32_0 = arith.constant 0 : i32
    %c0_i32_1 = arith.constant 0 : i32
    return %c0_i32, %c0_i32_0 : i32, i32
  }
  func.func @transform_3(%arg0: i32) -> (i32, i32) {
    %c0_i32 = arith.constant 0 : i32
    %c0_i32_0 = arith.constant 0 : i32
    %c0_i32_1 = arith.constant 0 : i32
    return %c0_i32, %c0_i32_0 : i32, i32
  }
  func.func @transform_4(%arg0: i32) -> (i32, i32) {
    %c0_i32 = arith.constant 0 : i32
    %c0_i32_0 = arith.constant 0 : i32
    %c0_i32_1 = arith.constant 0 : i32
    return %c0_i32, %c0_i32_0 : i32, i32
  }
  func.func @transform_5(%arg0: i32) -> (i32, i32, i32) {
    %c0_i32 = arith.constant 0 : i32
    %c0_i32_0 = arith.constant 0 : i32
    %c0_i32_1 = arith.constant 0 : i32
    return %arg0, %c0_i32, %c0_i32_0 : i32, i32, i32
  }
}

</mosaic_0001>

<llo_original>
// kernel: tpu_custom_call.1
$region0: #{tpu_custom_call.1}
  #allocation0 [shape = 'u32[]', space=smem, size = 0x4, offset = 0x4, fixed_abs, tag = 'smem constant byte address 0x4 - core index']
  #allocation1 [shape = 'u32[72,128]{1,0:T(1,128)}', space=vmem, size = 0x9000, scoped, tag = 'internal scratch']
  %s0 = inlined_call_operand.vmem [shape: f32[2,8,64], index: 0, kind: input, shape index: {}]
  %s1 = inlined_call_operand.vmem [shape: f32[32,8], index: 1, kind: input, shape index: {}]
  %s2 = inlined_call_operand.vmem [shape: f32[32,1], index: 2, kind: input, shape index: {}]
  %s3 = inlined_call_operand.vmem [shape: f32[32,1], index: 3, kind: input, shape index: {}]
  %s4 = inlined_call_operand.vmem [shape: f32[32,1], index: 4, kind: input, shape index: {}]
  %s5 = inlined_call_operand.hbm [shape: f32[2,32,64], index: 5, kind: output, shape index: {}]
  %s6 = sld [smem:[#allocation0]]
  $region53: #{tpu_custom_call.1} parent=0
    _
  %s8 = ssub.s32 1, %s6
  %s9 = scalar_select 0, %s8, %s6
  $region1: #{tpu_custom_call.1} parent=0
    #allocation2 [shape = 'u8[32768]{0}', space=vmem, size = 0x8000, scoped, tag = 'output window, operand 0']
    #allocation3 [shape = 's32[2]{0}', space=sflag, size = 0x8, scoped, tag = 'scoped memory for tpu_custom_call.1']
    %10 = vsyncpa [#allocation3], 0
    %s11 = scalar_lea.sflag [#allocation3], 1
    %12 = vsyncpa %s11, 0
    loop: start=0, step=1, limit=4
    $region2: #{tpu_custom_call.1} parent=1 // loop_pre_header
      _
    $region3: #{tpu_custom_call.1} parent=1 // loop_header
      %s14 = sphi 0, %s18
      %p15 = scmp.ge.s32.totalorder %s14, 4
      %s24 = sphi 0, %s26
      %s27 = sphi 0, %s24
      %s28 = sphi 0, %s27
      %s44 = sphi 0, %s28
      %s48 = sphi 0, %s48
      %s50 = sphi 0, %s48
      %s51 = sphi 0, %s50
      %s65 = sphi 0, %s51
      %s69 = sphi 0, %s69
      %s71 = sphi 0, %s69
      %s72 = sphi 0, %s71
      %s86 = sphi 0, %s72
      %s90 = sphi 0, %s90
      %s92 = sphi 0, %s90
      %s93 = sphi 0, %s92
      %s107 = sphi 0, %s93
      %s111 = sphi 0, %s111
      %s113 = sphi 0, %s111
      %s114 = sphi 0, %s113
      %s128 = sphi 0, %s114
      %s134 = sphi 0, %s136
      %s137 = sphi 0, %s134
      %s138 = sphi 0, %s137
      %s154 = sphi 0, %s138
    $region4: #{tpu_custom_call.1} parent=1 // loop_header_branch
      %17 = sbr.rel (%p15) target = $region8
    $region5: #{tpu_custom_call.1} parent=1 // loop_body
      %s19 = ssub.s32 %s14, 1
      %s20 = ssub.s32 %s14, 2
      %s21 = sadd.s32 %s14, 1
      %s22 = ssub.s32 %s14, %s21
      %p23 = scmp.eq.s32.totalorder %s22, 0
      %s25 = sadd.s32 %s24, 1
      %s26 = scalar_select %p23, %s24, %s25
      %p29 = pneg %p23
      %p30 = scmp.eq.s32.totalorder %s14, 1
      %p31 = por %p29, %p30
      %p32 = scmp.ne.s32.totalorder %s24, %s27
      %p33 = scmp.eq.s32.totalorder %s14, 0
      %p34 = por %p32, %p33
      %p35 = scmp.ne.s32.totalorder %s24, %s27
      %p36 = scmp.eq.s32.totalorder %s19, 1
      %p37 = por %p35, %p36
      %p38 = scmp.ne.s32.totalorder %s27, %s28
      %p39 = scmp.eq.s32.totalorder %s19, 0
      %p40 = por %p38, %p39
      %p41 = scmp.ne.s32.totalorder %s27, %s28
      %p42 = scmp.eq.s32.totalorder %s20, 1
      %p43 = por %p41, %p42
      %p45 = scmp.ne.s32.totalorder %s28, %s44
      %p46 = scmp.eq.s32.totalorder %s20, 0
      %p47 = por %p45, %p46
      %s49 = sadd.s32 %s48, 1
      %p52 = scmp.eq.s32.totalorder %s14, 1
      %p53 = scmp.ne.s32.totalorder %s48, %s50
      %p54 = scmp.eq.s32.totalorder %s14, 0
      %p55 = por %p53, %p54
      %p56 = scmp.ne.s32.totalorder %s48, %s50
      %p57 = scmp.eq.s32.totalorder %s19, 1
      %p58 = por %p56, %p57
      %p59 = scmp.ne.s32.totalorder %s50, %s51
      %p60 = scmp.eq.s32.totalorder %s19, 0
      %p61 = por %p59, %p60
      %p62 = scmp.ne.s32.totalorder %s50, %s51
      %p63 = scmp.eq.s32.totalorder %s20, 1
      %p64 = por %p62, %p63
      %p66 = scmp.ne.s32.totalorder %s51, %s65
      %p67 = scmp.eq.s32.totalorder %s20, 0
      %p68 = por %p66, %p67
      %s70 = sadd.s32 %s69, 1
      %p73 = scmp.eq.s32.totalorder %s14, 1
      %p74 = scmp.ne.s32.totalorder %s69, %s71
      %p75 = scmp.eq.s32.totalorder %s14, 0
      %p76 = por %p74, %p75
      %p77 = scmp.ne.s32.totalorder %s69, %s71
      %p78 = scmp.eq.s32.totalorder %s19, 1
      %p79 = por %p77, %p78
      %p80 = scmp.ne.s32.totalorder %s71, %s72
      %p81 = scmp.eq.s32.totalorder %s19, 0
      %p82 = por %p80, %p81
      %p83 = scmp.ne.s32.totalorder %s71, %s72
      %p84 = scmp.eq.s32.totalorder %s20, 1
      %p85 = por %p83, %p84
      %p87 = scmp.ne.s32.totalorder %s72, %s86
      %p88 = scmp.eq.s32.totalorder %s20, 0
      %p89 = por %p87, %p88
      %s91 = sadd.s32 %s90, 1
      %p94 = scmp.eq.s32.totalorder %s14, 1
      %p95 = scmp.ne.s32.totalorder %s90, %s92
      %p96 = scmp.eq.s32.totalorder %s14, 0
      %p97 = por %p95, %p96
      %p98 = scmp.ne.s32.totalorder %s90, %s92
      %p99 = scmp.eq.s32.totalorder %s19, 1
      %p100 = por %p98, %p99
      %p101 = scmp.ne.s32.totalorder %s92, %s93
      %p102 = scmp.eq.s32.totalorder %s19, 0
      %p103 = por %p101, %p102
      %p104 = scmp.ne.s32.totalorder %s92, %s93
      %p105 = scmp.eq.s32.totalorder %s20, 1
      %p106 = por %p104, %p105
      %p108 = scmp.ne.s32.totalorder %s93, %s107
      %p109 = scmp.eq.s32.totalorder %s20, 0
      %p110 = por %p108, %p109
      %s112 = sadd.s32 %s111, 1
      %p115 = scmp.eq.s32.totalorder %s14, 1
      %p116 = scmp.ne.s32.totalorder %s111, %s113
      %p117 = scmp.eq.s32.totalorder %s14, 0
      %p118 = por %p116, %p117
      %p119 = scmp.ne.s32.totalorder %s111, %s113
      %p120 = scmp.eq.s32.totalorder %s19, 1
      %p121 = por %p119, %p120
      %p122 = scmp.ne.s32.totalorder %s113, %s114
      %p123 = scmp.eq.s32.totalorder %s19, 0
      %p124 = por %p122, %p123
      %p125 = scmp.ne.s32.totalorder %s113, %s114
      %p126 = scmp.eq.s32.totalorder %s20, 1
      %p127 = por %p125, %p126
      %p129 = scmp.ne.s32.totalorder %s114, %s128
      %p130 = scmp.eq.s32.totalorder %s20, 0
      %p131 = por %p129, %p130
      %s132 = ssub.s32 %s14, %s21
      %p133 = scmp.eq.s32.totalorder %s132, 0
      %s135 = sadd.s32 %s134, 1
      %s136 = scalar_select %p133, %s134, %s135
      %p139 = pneg %p133
      %p140 = scmp.eq.s32.totalorder %s14, 1
      %p141 = por %p139, %p140
      %p142 = scmp.ne.s32.totalorder %s134, %s137
      %p143 = scmp.eq.s32.totalorder %s14, 0
      %p144 = por %p142, %p143
      %p145 = scmp.ne.s32.totalorder %s134, %s137
      %p146 = scmp.eq.s32.totalorder %s19, 1
      %p147 = por %p145, %p146
      %p148 = scmp.ne.s32.totalorder %s137, %s138
      %p149 = scmp.eq.s32.totalorder %s19, 0
      %p150 = por %p148, %p149
      %p151 = scmp.ne.s32.totalorder %s137, %s138
      %p152 = scmp.eq.s32.totalorder %s20, 1
      %p153 = por %p151, %p152
      %p155 = scmp.ne.s32.totalorder %s138, %s154
      %p156 = scmp.eq.s32.totalorder %s20, 0
      %p157 = por %p155, %p156
      %p158 = scmp.le.s32.totalorder 1, %s14
      %p159 = scmp.lt.s32.totalorder %s14, 3
      %p160 = pnand %p158, %p159
      %p161 = pneg %p160
      // Predicated region
      $region9: #{tpu_custom_call.1} parent=5 // pred_check
        _
      $region10: #{tpu_custom_call.1} parent=5 // pred_check_branch
        %163 = sbr.rel (%p160) target = $region12
      $region11: #{tpu_custom_call.1} parent=5 // pred_region
        %s164 = ssub.s32 %s14, 1
        // Predicated region
        $region13: #{tpu_custom_call.1} parent=11 // pred_check
          %p165 = pneg %p61
        $region14: #{tpu_custom_call.1} parent=11 // pred_check_branch
          %167 = sbr.rel (%p165) target = $region16
        $region15: #{tpu_custom_call.1} parent=11 // pred_region
          _
        $region16: #{tpu_custom_call.1} parent=11 // pred_fallthru
          _
        // Predicated region
        $region17: #{tpu_custom_call.1} parent=11 // pred_check
          %p168 = pneg %p82
        $region18: #{tpu_custom_call.1} parent=11 // pred_check_branch
          %170 = sbr.rel (%p168) target = $region20
        $region19: #{tpu_custom_call.1} parent=11 // pred_region
          _
        $region20: #{tpu_custom_call.1} parent=11 // pred_fallthru
          _
        // Predicated region
        $region21: #{tpu_custom_call.1} parent=11 // pred_check
          %p171 = pneg %p103
        $region22: #{tpu_custom_call.1} parent=11 // pred_check_branch
          %173 = sbr.rel (%p171) target = $region24
        $region23: #{tpu_custom_call.1} parent=11 // pred_region
          _
        $region24: #{tpu_custom_call.1} parent=11 // pred_fallthru
          _
        // Predicated region
        $region25: #{tpu_custom_call.1} parent=11 // pred_check
          %p174 = pneg %p124
        $region26: #{tpu_custom_call.1} parent=11 // pred_check_branch
          %176 = sbr.rel (%p174) target = $region28
        $region27: #{tpu_custom_call.1} parent=11 // pred_region
          _
        $region28: #{tpu_custom_call.1} parent=11 // pred_fallthru
          _
      $region12: #{tpu_custom_call.1} parent=5 // pred_fallthru
        _
      %p177 = scmp.lt.s32.totalorder %s14, 2
      // Predicated region
      $region29: #{tpu_custom_call.1} parent=5 // pred_check
        %p178 = pneg %p177
      $region30: #{tpu_custom_call.1} parent=5 // pred_check_branch
        %180 = sbr.rel (%p178) target = $region32
      $region31: #{tpu_custom_call.1} parent=5 // pred_region
        // Predicated region
        $region33: #{tpu_custom_call.1} parent=31 // pred_check
          %p181 = pneg %p34
        $region34: #{tpu_custom_call.1} parent=31 // pred_check_branch
          %183 = sbr.rel (%p181) target = $region36
        $region35: #{tpu_custom_call.1} parent=31 // pred_region
          %p184 = scmp.lt.s32.totalorder %s14, 1
          %s185 = scalar_select %p184, %s14, 1
          %s186 = smul.addr %s185, 8
          %s187 = scalar_lea.vmem %s0, %s186
        $region36: #{tpu_custom_call.1} parent=31 // pred_fallthru
          _
      $region32: #{tpu_custom_call.1} parent=5 // pred_fallthru
        _
      %p188 = scmp.le.s32.totalorder 1, %s14
      %p189 = scmp.lt.s32.totalorder %s14, 3
      %p190 = pnand %p188, %p189
      %p191 = pneg %p190
      // Predicated region
      $region37: #{tpu_custom_call.1} parent=5 // pred_check
        _
      $region38: #{tpu_custom_call.1} parent=5 // pred_check_branch
        %193 = sbr.rel (%p190) target = $region40
      $region39: #{tpu_custom_call.1} parent=5 // pred_region
        %s194 = ssub.s32 %s14, 1
        %p195 = scmp.lt.s32.totalorder %s19, 1
        %s196 = scalar_select %p195, %s19, 1
        %s197 = smul.addr %s196, 8
        %s198 = scalar_lea.vmem %s0, %s197
        %p199 = pneg %p40
        %p200 = pneg %p37
        %p201 = pneg %p61
        %p202 = pneg %p58
        %p203 = pneg %p82
        %p204 = pneg %p79
        %p205 = pneg %p103
        %p206 = pneg %p100
        %p207 = pneg %p124
        %p208 = pneg %p121
        %p209 = pneg %p150
        %p210 = pneg %p147
        %s211 = sand.u32 %s137, 1
        %s212 = scalar_lea.sflag [#allocation3], %s211
        %s213 = sand.u32 %s137, 1
        %s214 = smul.addr %s213, 32
        %s215 = scalar_lea.vmem [#allocation2], %s214
        %p216 = scmp.lt.s32.totalorder %s19, 1
        %s217 = scalar_select %p216, %s19, 1
        %s218 = smul.addr %s217, 8
        %s219 = scalar_lea.vmem %s0, %s218
        %v221 = vld [vmem:[%s1] sm:$0xff]
        %v222 = vld [vmem:[%s1 + $0x8] sm:$0xff]
        %v223 = vld [vmem:[%s1 + $0x10] sm:$0xff]
        %v224 = vld [vmem:[%s1 + $0x18] sm:$0xff]
        %v225 = vpack.c.bf16 %v222, %v221
        %v226 = vpack.c.bf16 %v224, %v223
        %v227 = vld [vmem:[%s219] sm:$0xff]
        %v228 = vpack.c.bf16 %v227, %v227
        %v229 = vld [vmem:[%s2] sm:$0xff]
        %v230 = vld [vmem:[%s2 + $0x8] sm:$0xff]
        %v231 = vld [vmem:[%s2 + $0x10] sm:$0xff]
        %v232 = vld [vmem:[%s2 + $0x18] sm:$0xff]
        %234 = vset.pattern.permute.xlu0 0
        %235 = vperm.xlu0 %234, %v229
        %v236 = vpop.permute.xlu0 %235
        %239 = vset.pattern.permute.xlu0 0
        %240 = vperm.xlu0 %239, %v230
        %v241 = vpop.permute.xlu0 %240
        %244 = vset.pattern.permute.xlu0 0
        %245 = vperm.xlu0 %244, %v231
        %v246 = vpop.permute.xlu0 %245
        %249 = vset.pattern.permute.xlu0 0
        %250 = vperm.xlu0 %249, %v232
        %v251 = vpop.permute.xlu0 %250
        %vm253 = vcmask 64512
        %v255 = vsel %vm253, %v225, 0
        %v258 = vsel %vm253, %v226, 0
        %vm260 = vcmask 1043456
        %v262 = vsel %vm260, %v228, 0
        %264 = vmatpush.bf16.msra.mxu0 0
        %265 = vmatpush.bf16.msra.mxu0 0
        %266 = vmatpush.bf16.msra.mxu0 0
        %267 = vmatpush.bf16.msra.mxu0 0
        %268 = vmatpush.bf16.msra.mxu0 0
        %269 = vmatpush.bf16.msra.mxu0 0
        %270 = vmatpush.bf16.msra.mxu0 0
        %271 = vmatpush.bf16.msra.mxu0 %v262
        %272 = vmatmul.bf16.gmra.mxu0 %v255
        %v273 = vpop.f32.mrf.mxu0
        %v274 = vadd.f32 %v236, %v273
        %v275 = vpop.f32.mrf.mxu0
        %v276 = vadd.f32 %v241, %v275
        %277 = vmatmul.bf16.gmra.mxu0 %v258
        %v278 = vpop.f32.mrf.mxu0
        %v279 = vadd.f32 %v246, %v278
        %v280 = vpop.f32.mrf.mxu0
        %v281 = vadd.f32 %v251, %v280
        %282 = vdwg.mxu0
        %vm283 = vcmask 523264
        %v284 = vsel %vm283, %v274, 0.0
        %285 = vadd.xlane.f32.xlu0 %v284
        %v286 = vpop.xlane.xlu0 %285
        %v287 = vsel %vm283, %v276, 0.0
        %288 = vadd.xlane.f32.xlu0 %v287
        %v289 = vpop.xlane.xlu0 %288
        %v290 = vsel %vm283, %v279, 0.0
        %291 = vadd.xlane.f32.xlu0 %v290
        %v292 = vpop.xlane.xlu0 %291
        %v293 = vsel %vm283, %v281, 0.0
        %294 = vadd.xlane.f32.xlu0 %v293
        %v295 = vpop.xlane.xlu0 %294
        %v296 = vmul.f32 %v274, %v274
        %v297 = vmul.f32 %v276, %v276
        %v298 = vmul.f32 %v279, %v279
        %v299 = vmul.f32 %v281, %v281
        %v300 = vsel %vm283, %v296, 0.0
        %301 = vadd.xlane.f32.xlu0 %v300
        %v302 = vpop.xlane.xlu0 %301
        %v303 = vsel %vm283, %v297, 0.0
        %304 = vadd.xlane.f32.xlu0 %v303
        %v305 = vpop.xlane.xlu0 %304
        %v306 = vsel %vm283, %v298, 0.0
        %307 = vadd.xlane.f32.xlu0 %v306
        %v308 = vpop.xlane.xlu0 %307
        %v309 = vsel %vm283, %v299, 0.0
        %310 = vadd.xlane.f32.xlu0 %v309
        %v311 = vpop.xlane.xlu0 %310
        %v312 = vrcp.pop 64.0
        %v313 = vmul.f32 64.0, %v312
        %v314 = vsub.f32 1.0, %v313
        %v315 = vmul.f32 %v312, %v314
        %v316 = vadd.f32 %v312, %v315
        %vm317 = vweird.f32 %v312
        %v318 = vsel %vm317, %v312, %v316
        %v319 = vmul.f32 %v286, %v318
        %v320 = vmul.f32 %v289, %v318
        %v321 = vmul.f32 %v292, %v318
        %v322 = vmul.f32 %v295, %v318
        %v323 = vmul.f32 %v302, %v318
        %v324 = vmul.f32 %v305, %v318
        %v325 = vmul.f32 %v308, %v318
        %v326 = vmul.f32 %v311, %v318
        %v327 = vmul.f32 %v319, %v319
        %v328 = vmul.f32 %v320, %v320
        %v329 = vmul.f32 %v321, %v321
        %v330 = vmul.f32 %v322, %v322
        %v331 = vsub.f32 %v323, %v327
        %v332 = vsub.f32 %v324, %v328
        %v333 = vsub.f32 %v325, %v329
        %v334 = vsub.f32 %v326, %v330
        %v335 = vadd.f32 %v331, 1e-05
        %v336 = vadd.f32 %v332, 1e-05
        %v337 = vadd.f32 %v333, 1e-05
        %v338 = vadd.f32 %v334, 1e-05
        %v339 = vrsqrt.pop %v335
        %v340 = vmul.f32 %v339, %v335
        %v341 = vmul.f32 %v340, %v339
        %v342 = vmul.f32 0.5, %v341
        %v343 = vsub.f32 1.5, %v342
        %v344 = vmul.f32 %v339, %v343
        %vm345 = vweird.f32 %v335
        %vm346 = vweird.f32 %v339
        %vm347 = vmor %vm345, %vm346
        %v348 = vsel %vm347, %v339, %v344
        %v349 = vrsqrt.pop %v336
        %v350 = vmul.f32 %v349, %v336
        %v351 = vmul.f32 %v350, %v349
        %v352 = vmul.f32 0.5, %v351
        %v353 = vsub.f32 1.5, %v352
        %v354 = vmul.f32 %v349, %v353
        %vm355 = vweird.f32 %v336
        %vm356 = vweird.f32 %v349
        %vm357 = vmor %vm355, %vm356
        %v358 = vsel %vm357, %v349, %v354
        %v359 = vrsqrt.pop %v337
        %v360 = vmul.f32 %v359, %v337
        %v361 = vmul.f32 %v360, %v359
        %v362 = vmul.f32 0.5, %v361
        %v363 = vsub.f32 1.5, %v362
        %v364 = vmul.f32 %v359, %v363
        %vm365 = vweird.f32 %v337
        %vm366 = vweird.f32 %v359
        %vm367 = vmor %vm365, %vm366
        %v368 = vsel %vm367, %v359, %v364
        %v369 = vrsqrt.pop %v338
        %v370 = vmul.f32 %v369, %v338
        %v371 = vmul.f32 %v370, %v369
        %v372 = vmul.f32 0.5, %v371
        %v373 = vsub.f32 1.5, %v372
        %v374 = vmul.f32 %v369, %v373
        %vm375 = vweird.f32 %v338
        %vm376 = vweird.f32 %v369
        %vm377 = vmor %vm375, %vm376
        %v378 = vsel %vm377, %v369, %v374
        %v379 = vld [vmem:[%s3] sm:$0xff]
        %v380 = vld [vmem:[%s3 + $0x8] sm:$0xff]
        %v381 = vld [vmem:[%s3 + $0x10] sm:$0xff]
        %v382 = vld [vmem:[%s3 + $0x18] sm:$0xff]
        %v383 = vmul.f32 %v379, %v348
        %v384 = vmul.f32 %v380, %v358
        %v385 = vmul.f32 %v381, %v368
        %v386 = vmul.f32 %v382, %v378
        %v387 = vld [vmem:[%s4] sm:$0xff]
        %v388 = vld [vmem:[%s4 + $0x8] sm:$0xff]
        %v389 = vld [vmem:[%s4 + $0x10] sm:$0xff]
        %v390 = vld [vmem:[%s4 + $0x18] sm:$0xff]
        %v391 = vmul.f32 %v319, %v383
        %v392 = vmul.f32 %v320, %v384
        %v393 = vmul.f32 %v321, %v385
        %v394 = vmul.f32 %v322, %v386
        %v395 = vsub.f32 %v387, %v391
        %v396 = vsub.f32 %v388, %v392
        %v397 = vsub.f32 %v389, %v393
        %v398 = vsub.f32 %v390, %v394
        %400 = vset.pattern.permute.xlu0 0
        %401 = vperm.xlu0 %400, %v383
        %v402 = vpop.permute.xlu0 %401
        %405 = vset.pattern.permute.xlu0 0
        %406 = vperm.xlu0 %405, %v384
        %v407 = vpop.permute.xlu0 %406
        %410 = vset.pattern.permute.xlu0 0
        %411 = vperm.xlu0 %410, %v385
        %v412 = vpop.permute.xlu0 %411
        %415 = vset.pattern.permute.xlu0 0
        %416 = vperm.xlu0 %415, %v386
        %v417 = vpop.permute.xlu0 %416
        %v419 = vmul.f32 %v274, %v402
        %v420 = vmul.f32 %v276, %v407
        %v421 = vmul.f32 %v279, %v412
        %v422 = vmul.f32 %v281, %v417
        %424 = vset.pattern.permute.xlu0 0
        %425 = vperm.xlu0 %424, %v395
        %v426 = vpop.permute.xlu0 %425
        %429 = vset.pattern.permute.xlu0 0
        %430 = vperm.xlu0 %429, %v396
        %v431 = vpop.permute.xlu0 %430
        %434 = vset.pattern.permute.xlu0 0
        %435 = vperm.xlu0 %434, %v397
        %v436 = vpop.permute.xlu0 %435
        %439 = vset.pattern.permute.xlu0 0
        %440 = vperm.xlu0 %439, %v398
        %v441 = vpop.permute.xlu0 %440
        %v443 = vadd.f32 %v419, %v426
        %v444 = vadd.f32 %v420, %v431
        %v445 = vadd.f32 %v421, %v436
        %v446 = vadd.f32 %v422, %v441
        %447 = vst.msk [vmem:[%s215] sm:$0xff] %vm283, %v443
        %448 = vst.msk [vmem:[%s215 + $0x8] sm:$0xff] %vm283, %v444
        %449 = vst.msk [vmem:[%s215 + $0x10] sm:$0xff] %vm283, %v445
        %450 = vst.msk [vmem:[%s215 + $0x18] sm:$0xff] %vm283, %v446
        %s451 = sand.u32 %s137, 1
        %s452 = scalar_lea.sflag [#allocation3], %s451
        %s453 = sand.u32 %s137, 1
        %s454 = smul.addr %s453, 32
        %s455 = scalar_lea.vmem [#allocation2], %s454
        // Predicated region
        $region41: #{tpu_custom_call.1} parent=39 // pred_check
          %p456 = pneg %p147
        $region42: #{tpu_custom_call.1} parent=39 // pred_check_branch
          %458 = sbr.rel (%p456) target = $region44
        $region43: #{tpu_custom_call.1} parent=39 // pred_region
          %460 = vsyncadd %s452, 0
          %s461 = smul.addr %s19, 4
          %s462 = smul.addr %s461, 8
          %s463 = scalar_lea.hbm %s5, %s462
          %s464 = sshll.u32 %s455, 4
          %s465 = int_to_ptr.vmem [resolvable:$true] %s464
          %s466 = sshll.u32 %s463, 4
          %s467 = int_to_ptr.hbm [resolvable:$true] %s466
          %472 = dma.vmem_to_hbm [thread:$0]  %s465, 512, %s467, %s452, 128, 128, 8
        $region44: #{tpu_custom_call.1} parent=39 // pred_fallthru
          _
      $region40: #{tpu_custom_call.1} parent=5 // pred_fallthru
        _
      %p473 = scmp.le.s32.totalorder 2, %s14
      // Predicated region
      $region45: #{tpu_custom_call.1} parent=5 // pred_check
        %p474 = pneg %p473
      $region46: #{tpu_custom_call.1} parent=5 // pred_check_branch
        %476 = sbr.rel (%p474) target = $region48
      $region47: #{tpu_custom_call.1} parent=5 // pred_region
        %s477 = ssub.s32 %s14, 2
        // Predicated region
        $region49: #{tpu_custom_call.1} parent=47 // pred_check
          %p478 = pneg %p153
        $region50: #{tpu_custom_call.1} parent=47 // pred_check_branch
          %480 = sbr.rel (%p478) target = $region52
        $region51: #{tpu_custom_call.1} parent=47 // pred_region
          %s481 = sand.u32 %s138, 1
          %s482 = scalar_lea.sflag [#allocation3], %s481
          %s483 = sand.u32 %s138, 1
          %s484 = smul.addr %s483, 32
          %s485 = scalar_lea.vmem [#allocation2], %s484
          %487 = dma.done %s482, 512
        $region52: #{tpu_custom_call.1} parent=47 // pred_fallthru
          _
      $region48: #{tpu_custom_call.1} parent=5 // pred_fallthru
        _
    $region6: #{tpu_custom_call.1} parent=1 // loop_footer
      %s18 = sadd.s32 1, %s14
    $region7: #{tpu_custom_call.1} parent=1 // loop_footer_branch
      %13 = sbr.rel target = $region3
    $region8: #{tpu_custom_call.1} parent=1 // loop_exit
      _
    %488 = vsyncpa [#allocation3], 1
    %s489 = scalar_lea.sflag [#allocation3], 1
    %490 = vsyncpa %s489, 1

</llo_original>
